<compile_context>
chip_gen: v6e
topology: v6e:2x2x1
jax: 0.10.0
libtpu: 0.0.40
codegen_flags: <defaults>
</compile_context>

<pallas_src>
import functools

import jax
import jax.numpy as jnp
from jax import lax
from jax.experimental import pallas as pl
from jax.experimental.pallas import tpu as pltpu

_LANES = 128


def _vmem_capacity_bytes():
    """Physical VMEM per core; falls back to the v7x minimum (safe everywhere)."""
    try:
        info = pltpu.get_tpu_info()
        v = getattr(info, "vmem_capacity_bytes", None)
        if v:
            return int(v)
    except Exception:
        pass
    return 64 * 1024 * 1024


# ----------------------------- Pallas kernels ---------------------------------
def _stats_kernel(f_ref, sum_out_ref, sq_out_ref, sum_ref, sq_ref, *, n_total):
    """Per-channel sum / sum-of-squares of f, streamed over N tiles.

    Lane-dense (Cf, 128) accumulators: each 128-lane chunk contributes two
    VALU adds (no per-tile cross-lane XLU reduce).  Columns >= n_total (the
    ragged tail and any clamped duplicate tiles) are masked to zero, so no
    HBM-side padding of f is needed.
    """
    o = pl.program_id(1)
    i = pl.program_id(2)
    n_inner = pl.num_programs(2)
    tn = f_ref.shape[2]
    chunks = tn // _LANES

    @pl.when(i == 0)
    def _init():
        sum_ref[...] = jnp.zeros_like(sum_ref)
        sq_ref[...] = jnp.zeros_like(sq_ref)

    base = (o * n_inner + i) * tn
    lane = lax.broadcasted_iota(jnp.int32, (1, _LANES), 1)

    def body(c, carry):
        start = pl.multiple_of(c * _LANES, _LANES)
        blk = f_ref[0, :, pl.ds(start, _LANES)].astype(jnp.float32)  # (Cf,128)
        col = base + c * _LANES + lane                               # (1,128)
        blk = jnp.where(col < n_total, blk, 0.0)
        sum_ref[...] = sum_ref[...] + blk
        sq_ref[...] = sq_ref[...] + blk * blk
        return carry

    lax.fori_loop(0, chunks, body, 0, unroll=chunks <= 8)

    @pl.when(i == n_inner - 1)
    def _finalize():
        sum_out_ref[0, 0] = sum_ref[...]
        sq_out_ref[0, 0] = sq_ref[...]


def _apply_kernel(f_ref, zq_ref, scale_ref, shift_ref, w_ref, bias_ref, o_ref):
    """out = (f * scale + shift) * conv_y(zq) + conv_b(zq) for one (Cf, tn) tile.

    conv_y / conv_b are fused into ONE stacked (2Cf, Cz) @ (Cz, tn) matmul.
    Garbage columns in the ragged last tile are per-column independent and
    their stores are dropped by Pallas' ragged-block masking.
    """
    cf = f_ref.shape[1]
    f = f_ref[0].astype(jnp.float32)                       # (Cf, tn)
    zq = zq_ref[0]                                         # (Cz, tn), I/O dtype
    yb = jnp.dot(w_ref[...], zq, preferred_element_type=jnp.float32)
    yb = yb + bias_ref[...]                                # (2Cf, tn) f32
    y = yb[:cf]
    b = yb[cf:]
    norm_f = f * scale_ref[0] + shift_ref[0]               # (Cf, tn) f32
    o_ref[0] = (norm_f * y + b).astype(o_ref.dtype)


# ----------------------------- JAX glue ----------------------------------------
def _upsample_zq_nearest(zq, T, H, W, dt):
    """Nearest-upsample zq to (T, H, W) with the module's odd-T first/rest
    split, flattened to (B, Cz, T*H*W).  Integer spatial factors use a cheap
    broadcast-repeat; anything else falls back to an exact nearest gather."""
    B, Cz, Tz, Hz, Wz = zq.shape
    if Tz == 1:
        ti = jnp.zeros((T,), jnp.int32)
    elif T > 1 and T % 2 == 1:
        ti_rest = (jnp.arange(T - 1) * (Tz - 1)) // (T - 1) + 1
        ti = jnp.concatenate([jnp.zeros((1,), ti_rest.dtype), ti_rest])
    else:
        ti = (jnp.arange(T) * Tz) // T
    z = jnp.take(zq.astype(dt), ti, axis=2)                # (B,Cz,T,Hz,Wz) small
    if H % Hz == 0 and W % Wz == 0:
        z = jnp.repeat(z, H // Hz, axis=3)                 # nearest == h // fh
        z = jnp.repeat(z, W // Wz, axis=4)
    else:
        z = jnp.take(z, (jnp.arange(H) * Hz) // H, axis=3)
        z = jnp.take(z, (jnp.arange(W) * Wz) // W, axis=4)
    return z.reshape(B, Cz, T * H * W)


def spatial_norm_3d(f, zq, params, *, num_groups, eps, max_tile_n=8192):
    """Forward pass of SpatialNorm3D (add_conv=False, single rank)."""
    B, Cf, T, H, W = f.shape
    Cz = zq.shape[1]
    N = T * H * W
    dt = f.dtype
    itemsize = jnp.dtype(dt).itemsize

    # --- zq nearest-upsample to f's grid (I/O dtype, no gather, no padding) ---
    # TODO(synk): fuse the upsample into the pass-2 index_map so zq_up is never
    # materialized in HBM (saves ~2*Cz*N bytes of HBM traffic).
    zq_up = _upsample_zq_nearest(zq, T, H, W, dt)
    f2 = f.reshape(B, Cf, N)                               # free reshape

    # --- VMEM-aware lane-tile sizing (generation aware: v7x has 64 MiB) -------
    vmem_phys = _vmem_capacity_bytes()
    # pass-2 bytes per lane: double-buffered f-in / zq-in / out in I/O dtype,
    # plus f32 intermediates (f cast + stacked yb + norm_f) ~= 16*Cf bytes.
    per_lane = 2 * (2 * Cf + Cz) * itemsize + 16 * Cf
    budget = max(4 * 1024 * 1024, int(vmem_phys * 0.4))
    tn = (budget // per_lane) // _LANES * _LANES
    tn = max(_LANES, min(tn, max_tile_n))
    if N >= _LANES:
        tn = min(tn, (N // _LANES) * _LANES)               # never over-tile small N
    n_tiles = pl.cdiv(N, tn)
    vmem_limit = int(min(vmem_phys * 3 // 4, 100 * 1024 * 1024))

    # --- pass 1: per-channel sum / sumsq over tiled N (no padding) ------------
    # N tiles split over (n_outer 'parallel', n_inner 'arbitrary') so both v7x
    # TensorCores are busy even when B == 1; partials reduced in XLA below.
    n_outer = 2 if n_tiles >= 2 else 1
    n_inner = pl.cdiv(n_tiles, n_outer)

    def f_stats_map(b, o, i):
        # Clamp the (possibly overshooting) last grid point; its contribution
        # is zeroed by the col < N mask inside the kernel.
        return (b, 0, jnp.minimum(o * n_inner + i, n_tiles - 1))

    sum_pp, sq_pp = pl.pallas_call(
        functools.partial(_stats_kernel, n_total=N),
        out_shape=(jax.ShapeDtypeStruct((B, n_outer, Cf, _LANES), jnp.float32),
                   jax.ShapeDtypeStruct((B, n_outer, Cf, _LANES), jnp.float32)),
        grid_spec=pltpu.PrefetchScalarGridSpec(
            num_scalar_prefetch=0,
            grid=(B, n_outer, n_inner),
            in_specs=[pl.BlockSpec((1, Cf, tn), f_stats_map)],
            out_specs=[
                pl.BlockSpec((1, 1, Cf, _LANES), lambda b, o, i: (b, o, 0, 0)),
                pl.BlockSpec((1, 1, Cf, _LANES), lambda b, o, i: (b, o, 0, 0)),
            ],
            scratch_shapes=[pltpu.VMEM((Cf, _LANES), jnp.float32),
                            pltpu.VMEM((Cf, _LANES), jnp.float32)]),
        compiler_params=pltpu.CompilerParams(
            dimension_semantics=("parallel", "parallel", "arbitrary"),
            vmem_limit_bytes=vmem_limit),
        cost_estimate=pl.CostEstimate(
            flops=4 * B * Cf * N, transcendentals=0,
            bytes_accessed=B * Cf * N * itemsize),
    )(f2)

    # --- finalize (tiny XLA): group mean/var -> per-channel scale/shift, f32 --
    s = jnp.sum(sum_pp, axis=(1, 3))                       # (B, Cf)
    ss = jnp.sum(sq_pp, axis=(1, 3))
    Cg = Cf // num_groups
    cnt = float(Cg * N)                                    # true count (no pad)
    mean = s.reshape(B, num_groups, Cg).sum(axis=2) / cnt
    var = ss.reshape(B, num_groups, Cg).sum(axis=2) / cnt - mean * mean
    var = jnp.maximum(var, 0.0)                            # numeric guard
    inv = lax.rsqrt(var + eps)
    gamma = params["gamma"].astype(jnp.float32)
    beta = params["beta"].astype(jnp.float32)
    scale = jnp.repeat(inv, Cg, axis=1) * gamma[None, :]              # (B, Cf)
    shift = beta[None, :] - jnp.repeat(mean, Cg, axis=1) * scale      # (B, Cf)
    scale = scale.reshape(B, Cf, 1)
    shift = shift.reshape(B, Cf, 1)

    # --- stacked 1x1x1 conv params --------------------------------------------
    w = jnp.concatenate([params["wy"], params["wb"]], axis=0).astype(dt)  # (2Cf,Cz)
    bias = jnp.concatenate([params["by"], params["bb"]], axis=0)
    bias = bias.astype(jnp.float32).reshape(2 * Cf, 1)

    # --- pass 2: fused normalize + stacked 1x1x1 convs + FMA (no padding) -----
    out = pl.pallas_call(
        _apply_kernel,
        out_shape=jax.ShapeDtypeStruct((B, Cf, N), dt),
        grid_spec=pltpu.PrefetchScalarGridSpec(
            num_scalar_prefetch=0,
            grid=(B, n_tiles),
            in_specs=[
                pl.BlockSpec((1, Cf, tn), lambda b, n: (b, 0, n)),   # f
                pl.BlockSpec((1, Cz, tn), lambda b, n: (b, 0, n)),   # zq upsampled
                pl.BlockSpec((1, Cf, 1), lambda b, n: (b, 0, 0)),    # scale
                pl.BlockSpec((1, Cf, 1), lambda b, n: (b, 0, 0)),    # shift
                pl.BlockSpec((2 * Cf, Cz), lambda b, n: (0, 0)),     # stacked W
                pl.BlockSpec((2 * Cf, 1), lambda b, n: (0, 0)),      # stacked bias
            ],
            out_specs=pl.BlockSpec((1, Cf, tn), lambda b, n: (b, 0, n))),
        compiler_params=pltpu.CompilerParams(
            dimension_semantics=("parallel", "parallel"),
            vmem_limit_bytes=vmem_limit),
        cost_estimate=pl.CostEstimate(
            flops=2 * B * (2 * Cf) * Cz * N + 6 * B * Cf * N,
            transcendentals=0,
            bytes_accessed=B * (2 * Cf + Cz) * N * itemsize),
    )(f2, zq_up, scale, shift, w, bias)

    return out.reshape(B, Cf, T, H, W)                     # free reshape, no slice


# ----------------------------- Pure-JAX reference ------------------------------
def _nearest_interp_3d(x, out_size):
    """PyTorch F.interpolate(mode='nearest') for 5D NCTHW tensors."""
    B, C, T, H, W = x.shape
    oT, oH, oW = out_size
    ti = (jnp.arange(oT) * T) // oT
    hi = (jnp.arange(oH) * H) // oH
    wi = (jnp.arange(oW) * W) // oW
    x = jnp.take(x, ti, axis=2)
    x = jnp.take(x, hi, axis=3)
    x = jnp.take(x, wi, axis=4)
    return x


def _reference(f, zq, params, *, num_groups, eps):
    B, Cf, T, H, W = f.shape
    if T > 1 and T % 2 == 1:
        zq_first = _nearest_interp_3d(zq[:, :, :1], (1, H, W))
        zq_rest = _nearest_interp_3d(zq[:, :, 1:], (T - 1, H, W))
        zq_i = jnp.concatenate([zq_first, zq_rest], axis=2)
    else:
        zq_i = _nearest_interp_3d(zq, (T, H, W))

    x = f.reshape(B, num_groups, -1)
    mean = x.mean(axis=2, keepdims=True)
    var = x.var(axis=2, keepdims=True)
    xn = (x - mean) / jnp.sqrt(var + eps)
    xn = xn.reshape(B, Cf, T, H, W)
    xn = xn * params["gamma"][None, :, None, None, None] \
            + params["beta"][None, :, None, None, None]
    y = jnp.einsum("oc,bcthw->bothw", params["wy"], zq_i) \
        + params["by"][None, :, None, None, None]
    b = jnp.einsum("oc,bcthw->bothw", params["wb"], zq_i) \
        + params["bb"][None, :, None, None, None]
    return xn * y + b


# ----------------------------- main ---------------------------------------------
if __name__ == "__main__":
    key = jax.random.PRNGKey(0)
    k = jax.random.split(key, 8)

    # Small shapes: f_channels=32, zq_channels=16, num_groups=8
    B, Cf, Cz = 2, 32, 16
    T, H, W = 3, 8, 8           # f spatial size (T odd and > 1 -> split path)
    Tz, Hz, Wz = 2, 4, 4        # zq spatial size (gets nearest-upsampled)
    num_groups, eps = 8, 1e-6

    f = jax.random.normal(k[0], (B, Cf, T, H, W), dtype=jnp.float32)
    zq = jax.random.normal(k[1], (B, Cz, Tz, Hz, Wz), dtype=jnp.float32)

    params = {
        "gamma": jax.random.normal(k[2], (Cf,), dtype=jnp.float32) * 0.1 + 1.0,
        "beta": jax.random.normal(k[3], (Cf,), dtype=jnp.float32) * 0.1,
        # conv_y / conv_b: 1x1x1 conv weights (chan_out=Cf, chan_in=Cz)
        "wy": jax.random.normal(k[4], (Cf, Cz), dtype=jnp.float32) * 0.1,
        "by": jax.random.normal(k[5], (Cf,), dtype=jnp.float32) * 0.1,
        "wb": jax.random.normal(k[6], (Cf, Cz), dtype=jnp.float32) * 0.1,
        "bb": jax.random.normal(k[7], (Cf,), dtype=jnp.float32) * 0.1,
    }

    # --- float32 I/O: must match the f32 reference tightly ---------------------
    out = spatial_norm_3d(f, zq, params, num_groups=num_groups, eps=eps)
    out = jax.block_until_ready(out)
    ref = _reference(f, zq, params, num_groups=num_groups, eps=eps)
    assert out.shape == (B, Cf, T, H, W)
    assert jnp.allclose(out, ref, rtol=1e-4, atol=1e-4), \
        f"max abs err {jnp.max(jnp.abs(out - ref))}"

    # --- bf16 HBM I/O path (halves bandwidth); stats/math still f32 ------------
    out_bf16 = spatial_norm_3d(f.astype(jnp.bfloat16), zq.astype(jnp.bfloat16),
                               params, num_groups=num_groups, eps=eps)
    out_bf16 = jax.block_until_ready(out_bf16)
    assert out_bf16.dtype == jnp.bfloat16
    mean_err = jnp.mean(jnp.abs(out_bf16.astype(jnp.float32) - ref))
    assert bool(jnp.isfinite(mean_err)) and float(mean_err) < 0.05, \
        f"bf16 mean abs err {mean_err}"

    print("KERNEL_OK")
</pallas_src>

<mosaic_0001>
module attributes {stable_mosaic.version = 11 : i64} {
  func.func @_stats_kernel(%arg0: i32, %arg1: i32, %arg2: i32, %arg3: memref<1x32x128xf32, #tpu.memory_space<vmem>>, %arg4: memref<1x1x32x128xf32, #tpu.memory_space<vmem>>, %arg5: memref<1x1x32x128xf32, #tpu.memory_space<vmem>>, %arg6: memref<32x128xf32, #tpu.memory_space<vmem>>, %arg7: memref<32x128xf32, #tpu.memory_space<vmem>>) attributes {dimension_semantics = [#tpu.dimension_semantics<parallel>, #tpu.dimension_semantics<parallel>, #tpu.dimension_semantics<arbitrary>], iteration_bounds = array<i64: 2, 2, 1>, scalar_prefetch = 0 : i64, scratch_operands = 2 : i64, tpu.core_type = #tpu.core_type<tc>, window_params = [{transform_indices = @transform_0, window_bounds = array<i64: 1, 32, 128>}, {transform_indices = @transform_1, window_bounds = array<i64: 1, 1, 32, 128>}, {transform_indices = @transform_2, window_bounds = array<i64: 1, 1, 32, 128>}]} {
    %c0_i32 = arith.constant 0 : i32
    %0 = arith.cmpi eq, %arg2, %c0_i32 : i32
    %1 = arith.extui %0 : i1 to i32
    %c0_i32_0 = arith.constant 0 : i32
    %2 = arith.cmpi ne, %1, %c0_i32_0 : i32
    scf.if %2 {
      %cst_16 = arith.constant 0.000000e+00 : f32
      %32 = vector.broadcast %cst_16 : f32 to vector<32x128xf32>
      %c0_17 = arith.constant 0 : index
      %c0_18 = arith.constant 0 : index
      %33 = vector.load %arg6[%c0_17, %c0_18] : memref<32x128xf32, #tpu.memory_space<vmem>>, vector<32x128xf32>
      tpu.vector_store %arg6[%c0_17, %c0_18], %32 {strides = array<i32>} : memref<32x128xf32, #tpu.memory_space<vmem>>, vector<32x128xf32>,
      %cst_19 = arith.constant 0.000000e+00 : f32
      %34 = vector.broadcast %cst_19 : f32 to vector<32x128xf32>
      %c0_20 = arith.constant 0 : index
      %c0_21 = arith.constant 0 : index
      %35 = vector.load %arg7[%c0_20, %c0_21] : memref<32x128xf32, #tpu.memory_space<vmem>>, vector<32x128xf32>
      tpu.vector_store %arg7[%c0_20, %c0_21], %34 {strides = array<i32>} : memref<32x128xf32, #tpu.memory_space<vmem>>, vector<32x128xf32>,
    } else {
    }
    %c1_i32 = arith.constant 1 : i32
    %3 = arith.muli %arg1, %c1_i32 : i32
    %4 = arith.addi %3, %arg2 : i32
    %c128_i32 = arith.constant 128 : i32
    %5 = arith.muli %4, %c128_i32 : i32
    %6 = tpu.iota {dimensions = array<i32: 1>} : vector<1x128xi32>
    %c0_i32_1 = arith.constant 0 : i32
    %c128_i32_2 = arith.constant 128 : i32
    %7 = arith.muli %c0_i32_1, %c128_i32_2 : i32
    %8 = tpu.assume_multiple %7, 128 : i32
    %c0 = arith.constant 0 : index
    %c0_3 = arith.constant 0 : index
    %9 = arith.index_cast %8 : i32 to index
    %10 = vector.load %arg3[%c0, %c0_3, %9] : memref<1x32x128xf32, #tpu.memory_space<vmem>>, vector<1x32x128xf32>
    %11 = vector.shape_cast %10 : vector<1x32x128xf32> to vector<32x128xf32>
    %c128_i32_4 = arith.constant 128 : i32
    %12 = arith.muli %c0_i32_1, %c128_i32_4 : i32
    %13 = arith.addi %5, %12 : i32
    %14 = vector.broadcast %13 : i32 to vector<1x128xi32>
    %15 = arith.addi %14, %6 : vector<1x128xi32>
    %c192_i32 = arith.constant 192 : i32
    %16 = vector.broadcast %c192_i32 : i32 to vector<1x128xi32>
    %17 = arith.cmpi slt, %15, %16 : vector<1x128xi32>
    %cst = arith.constant 0.000000e+00 : f32
    %18 = vector.shape_cast %17 : vector<1x128xi1> to vector<1x128xi1>
    %19 = vector.broadcast %18 : vector<1x128xi1> to vector<32x128xi1>
    %20 = vector.broadcast %cst : f32 to vector<32x128xf32>
    %21 = arith.select %19, %11, %20 : vector<32x128xi1>, vector<32x128xf32>
    %c0_5 = arith.constant 0 : index
    %c0_6 = arith.constant 0 : index
    %22 = vector.load %arg6[%c0_5, %c0_6] : memref<32x128xf32, #tpu.memory_space<vmem>>, vector<32x128xf32>
    %23 = arith.addf %22, %21 : vector<32x128xf32>
    %c0_7 = arith.constant 0 : index
    %c0_8 = arith.constant 0 : index
    %24 = vector.load %arg6[%c0_7, %c0_8] : memref<32x128xf32, #tpu.memory_space<vmem>>, vector<32x128xf32>
    tpu.vector_store %arg6[%c0_7, %c0_8], %23 {strides = array<i32>} : memref<32x128xf32, #tpu.memory_space<vmem>>, vector<32x128xf32>,
    %c0_9 = arith.constant 0 : index
    %c0_10 = arith.constant 0 : index
    %25 = vector.load %arg7[%c0_9, %c0_10] : memref<32x128xf32, #tpu.memory_space<vmem>>, vector<32x128xf32>
    %26 = arith.mulf %21, %21 : vector<32x128xf32>
    %27 = arith.addf %25, %26 : vector<32x128xf32>
    %c0_11 = arith.constant 0 : index
    %c0_12 = arith.constant 0 : index
    %28 = vector.load %arg7[%c0_11, %c0_12] : memref<32x128xf32, #tpu.memory_space<vmem>>, vector<32x128xf32>
    tpu.vector_store %arg7[%c0_11, %c0_12], %27 {strides = array<i32>} : memref<32x128xf32, #tpu.memory_space<vmem>>, vector<32x128xf32>,
    %c1_i32_13 = arith.constant 1 : i32
    %c0_i32_14 = arith.constant 0 : i32
    %29 = arith.cmpi eq, %arg2, %c0_i32_14 : i32
    %30 = arith.extui %29 : i1 to i32
    %c0_i32_15 = arith.constant 0 : i32
    %31 = arith.cmpi ne, %30, %c0_i32_15 : i32
    scf.if %31 {
      %c0_16 = arith.constant 0 : index
      %c0_17 = arith.constant 0 : index
      %32 = vector.load %arg6[%c0_16, %c0_17] : memref<32x128xf32, #tpu.memory_space<vmem>>, vector<32x128xf32>
      %c0_18 = arith.constant 0 : index
      %c0_19 = arith.constant 0 : index
      %c0_20 = arith.constant 0 : index
      %c0_21 = arith.constant 0 : index
      %33 = vector.load %arg4[%c0_18, %c0_19, %c0_20, %c0_21] : memref<1x1x32x128xf32, #tpu.memory_space<vmem>>, vector<1x1x32x128xf32>
      %34 = vector.shape_cast %33 : vector<1x1x32x128xf32> to vector<32x128xf32>
      %35 = vector.shape_cast %32 : vector<32x128xf32> to vector<1x1x32x128xf32>
      tpu.vector_store %arg4[%c0_18, %c0_19, %c0_20, %c0_21], %35 {strides = array<i32>} : memref<1x1x32x128xf32, #tpu.memory_space<vmem>>, vector<1x1x32x128xf32>,
      %c0_22 = arith.constant 0 : index
      %c0_23 = arith.constant 0 : index
      %36 = vector.load %arg7[%c0_22, %c0_23] : memref<32x128xf32, #tpu.memory_space<vmem>>, vector<32x128xf32>
      %c0_24 = arith.constant 0 : index
      %c0_25 = arith.constant 0 : index
      %c0_26 = arith.constant 0 : index
      %c0_27 = arith.constant 0 : index
      %37 = vector.load %arg5[%c0_24, %c0_25, %c0_26, %c0_27] : memref<1x1x32x128xf32, #tpu.memory_space<vmem>>, vector<1x1x32x128xf32>
      %38 = vector.shape_cast %37 : vector<1x1x32x128xf32> to vector<32x128xf32>
      %39 = vector.shape_cast %36 : vector<32x128xf32> to vector<1x1x32x128xf32>
      tpu.vector_store %arg5[%c0_24, %c0_25, %c0_26, %c0_27], %39 {strides = array<i32>} : memref<1x1x32x128xf32, #tpu.memory_space<vmem>>, vector<1x1x32x128xf32>,
    } else {
    }
    return
  }
  func.func @transform_0(%arg0: i32, %arg1: i32, %arg2: i32) -> (i32, i32, i32) {
    %c1_i32 = arith.constant 1 : i32
    %0 = arith.muli %arg1, %c1_i32 : i32
    %1 = arith.addi %0, %arg2 : i32
    %c1_i32_0 = arith.constant 1 : i32
    %2 = arith.minsi %1, %c1_i32_0 : i32
    %c0_i32 = arith.constant 0 : i32
    %c0_i32_1 = arith.constant 0 : i32
    return %arg0, %c0_i32, %2 : i32, i32, i32
  }
  func.func @transform_1(%arg0: i32, %arg1: i32, %arg2: i32) -> (i32, i32, i32, i32) {
    %c0_i32 = arith.constant 0 : i32
    %c0_i32_0 = arith.constant 0 : i32
    %c0_i32_1 = arith.constant 0 : i32
    return %arg0, %arg1, %c0_i32, %c0_i32_0 : i32, i32, i32, i32
  }
  func.func @transform_2(%arg0: i32, %arg1: i32, %arg2: i32) -> (i32, i32, i32, i32) {
    %c0_i32 = arith.constant 0 : i32
    %c0_i32_0 = arith.constant 0 : i32
    %c0_i32_1 = arith.constant 0 : i32
    return %arg0, %arg1, %c0_i32, %c0_i32_0 : i32, i32, i32, i32
  }
}

</mosaic_0001>

<llo_original>
// kernel: tpu_custom_call.1
$region0: #{tpu_custom_call.1}
  #allocation0 [shape = 'u32[]', space=smem, size = 0x4, offset = 0x4, fixed_abs, tag = 'smem constant byte address 0x4 - core index']
  #allocation1 [shape = 'u32[144,128]{1,0:T(1,128)}', space=vmem, size = 0x12000, scoped, tag = 'internal scratch']
  #allocation2 [shape = 'f32[32,128]{1,0:T(8,128)}', space=vmem, size = 0x4000, scoped, tag = 'scratch operand']
  #allocation3 [shape = 'f32[32,128]{1,0:T(8,128)}', space=vmem, size = 0x4000, scoped, tag = 'scratch operand']
  %s0 = inlined_call_operand.hbm [shape: f32[2,32,192], index: 0, kind: input, shape index: {}]
  %s1 = inlined_call_operand.hbm [shape: f32[2,2,32,128], index: 1, kind: output, shape index: {0}]
  %s2 = inlined_call_operand.hbm [shape: f32[2,2,32,128], index: 2, kind: output, shape index: {1}]
  %3 = xla_tuple %s1, %s2
  %s4 = sld [smem:[#allocation0]]
  $region57: #{tpu_custom_call.1} parent=0
    _
  %s6 = ssub.s32 1, %s4
  %s7 = scalar_select 0, %s6, %s4
  $region1: #{tpu_custom_call.1} parent=0
    #allocation4 [shape = 'u8[32768]{0}', space=vmem, size = 0x8000, scoped, tag = 'input window, operand 0']
    #allocation5 [shape = 's32[2]{0}', space=sflag, size = 0x8, scoped, tag = 'scoped memory for tpu_custom_call.1']
    #allocation6 [shape = 's32[2]{0}', space=sflag, size = 0x8, scoped, tag = 'scoped memory for tpu_custom_call.1']
    #allocation7 [shape = 'u8[32768]{0}', space=vmem, size = 0x8000, scoped, tag = 'output window, operand 0']
    #allocation8 [shape = 'u8[32768]{0}', space=vmem, size = 0x8000, scoped, tag = 'output window, operand 1']
    #allocation9 [shape = 's32[2]{0}', space=sflag, size = 0x8, scoped, tag = 'scoped memory for tpu_custom_call.1']
    %8 = vsyncpa [#allocation5], 0
    %s9 = scalar_lea.sflag [#allocation5], 1
    %10 = vsyncpa %s9, 0
    %11 = vsyncpa [#allocation6], 0
    %s12 = scalar_lea.sflag [#allocation6], 1
    %13 = vsyncpa %s12, 0
    %14 = vsyncpa [#allocation9], 0
    %s15 = scalar_lea.sflag [#allocation9], 1
    %16 = vsyncpa %s15, 0
    loop: start=0, step=1, limit=6
    $region2: #{tpu_custom_call.1} parent=1 // loop_pre_header
      _
    $region3: #{tpu_custom_call.1} parent=1 // loop_header
      %s18 = sphi 0, %s22
      %p19 = scmp.ge.s32.totalorder %s18, 6
      %s25 = sphi 0, %s44
      %s26 = sphi 0, %s40
      %s27 = sphi 0, %s36
      %s28 = sphi 0, %s25
      %s29 = sphi 0, %s26
      %s30 = sphi 0, %s27
      %s31 = sphi 0, %s28
      %s32 = sphi 0, %s29
      %s33 = sphi 0, %s30
      %s55 = sphi 0, %s57
      %s58 = sphi 0, %s55
      %s59 = sphi 0, %s58
      %s75 = sphi 0, %s59
      %s83 = sphi 0, %s85
      %s86 = sphi 0, %s83
      %s87 = sphi 0, %s86
      %s103 = sphi 0, %s87
      %s111 = sphi 0, %s113
      %s114 = sphi 0, %s111
      %s115 = sphi 0, %s114
      %s131 = sphi 0, %s115
    $region4: #{tpu_custom_call.1} parent=1 // loop_header_branch
      %21 = sbr.rel (%p19) target = $region8
    $region5: #{tpu_custom_call.1} parent=1 // loop_body
      %s23 = ssub.s32 %s18, 1
      %s24 = ssub.s32 %s18, 2
      %s34 = sadd.s32 1, %s27
      %p35 = scmp.ge.s32.totalorder %s34, 1
      %s36 = scalar_select %p35, 0, %s34
      %s37 = sadd.s32 1, %s26
      %s38 = scalar_select %p35, %s37, %s26
      %p39 = scmp.ge.s32.totalorder %s38, 2
      %s40 = scalar_select %p39, 0, %s38
      %s41 = sadd.s32 1, %s25
      %s42 = scalar_select %p39, %s41, %s25
      %p43 = scmp.ge.s32.totalorder %s42, 2
      %s44 = scalar_select %p43, 0, %s42
      %s45 = sadd.s32 %s26, %s27
      %p46 = scmp.lt.s32.totalorder %s45, 1
      %s47 = scalar_select %p46, %s45, 1
      %s48 = sadd.s32 %s40, %s36
      %p49 = scmp.lt.s32.totalorder %s48, 1
      %s50 = scalar_select %p49, %s48, 1
      %s51 = ssub.s32 %s25, %s44
      %s52 = ssub.s32 %s47, %s50
      %s53 = sor.u32 %s51, %s52
      %p54 = scmp.eq.s32.totalorder %s53, 0
      %s56 = sadd.s32 %s55, 1
      %s57 = scalar_select %p54, %s55, %s56
      %p60 = pneg %p54
      %p61 = scmp.eq.s32.totalorder %s18, 3
      %p62 = por %p60, %p61
      %p63 = scmp.ne.s32.totalorder %s55, %s58
      %p64 = scmp.eq.s32.totalorder %s18, 0
      %p65 = por %p63, %p64
      %p66 = scmp.ne.s32.totalorder %s55, %s58
      %p67 = scmp.eq.s32.totalorder %s23, 3
      %p68 = por %p66, %p67
      %p69 = scmp.ne.s32.totalorder %s58, %s59
      %p70 = scmp.eq.s32.totalorder %s23, 0
      %p71 = por %p69, %p70
      %p72 = scmp.ne.s32.totalorder %s58, %s59
      %p73 = scmp.eq.s32.totalorder %s24, 3
      %p74 = por %p72, %p73
      %p76 = scmp.ne.s32.totalorder %s59, %s75
      %p77 = scmp.eq.s32.totalorder %s24, 0
      %p78 = por %p76, %p77
      %s79 = ssub.s32 %s25, %s44
      %s80 = ssub.s32 %s26, %s40
      %s81 = sor.u32 %s79, %s80
      %p82 = scmp.eq.s32.totalorder %s81, 0
      %s84 = sadd.s32 %s83, 1
      %s85 = scalar_select %p82, %s83, %s84
      %p88 = pneg %p82
      %p89 = scmp.eq.s32.totalorder %s18, 3
      %p90 = por %p88, %p89
      %p91 = scmp.ne.s32.totalorder %s83, %s86
      %p92 = scmp.eq.s32.totalorder %s18, 0
      %p93 = por %p91, %p92
      %p94 = scmp.ne.s32.totalorder %s83, %s86
      %p95 = scmp.eq.s32.totalorder %s23, 3
      %p96 = por %p94, %p95
      %p97 = scmp.ne.s32.totalorder %s86, %s87
      %p98 = scmp.eq.s32.totalorder %s23, 0
      %p99 = por %p97, %p98
      %p100 = scmp.ne.s32.totalorder %s86, %s87
      %p101 = scmp.eq.s32.totalorder %s24, 3
      %p102 = por %p100, %p101
      %p104 = scmp.ne.s32.totalorder %s87, %s103
      %p105 = scmp.eq.s32.totalorder %s24, 0
      %p106 = por %p104, %p105
      %s107 = ssub.s32 %s25, %s44
      %s108 = ssub.s32 %s26, %s40
      %s109 = sor.u32 %s107, %s108
      %p110 = scmp.eq.s32.totalorder %s109, 0
      %s112 = sadd.s32 %s111, 1
      %s113 = scalar_select %p110, %s111, %s112
      %p116 = pneg %p110
      %p117 = scmp.eq.s32.totalorder %s18, 3
      %p118 = por %p116, %p117
      %p119 = scmp.ne.s32.totalorder %s111, %s114
      %p120 = scmp.eq.s32.totalorder %s18, 0
      %p121 = por %p119, %p120
      %p122 = scmp.ne.s32.totalorder %s111, %s114
      %p123 = scmp.eq.s32.totalorder %s23, 3
      %p124 = por %p122, %p123
      %p125 = scmp.ne.s32.totalorder %s114, %s115
      %p126 = scmp.eq.s32.totalorder %s23, 0
      %p127 = por %p125, %p126
      %p128 = scmp.ne.s32.totalorder %s114, %s115
      %p129 = scmp.eq.s32.totalorder %s24, 3
      %p130 = por %p128, %p129
      %p132 = scmp.ne.s32.totalorder %s115, %s131
      %p133 = scmp.eq.s32.totalorder %s24, 0
      %p134 = por %p132, %p133
      %p135 = scmp.le.s32.totalorder 1, %s18
      %p136 = scmp.lt.s32.totalorder %s18, 5
      %p137 = pnand %p135, %p136
      %p138 = pneg %p137
      // Predicated region
      $region9: #{tpu_custom_call.1} parent=5 // pred_check
        _
      $region10: #{tpu_custom_call.1} parent=5 // pred_check_branch
        %140 = sbr.rel (%p137) target = $region12
      $region11: #{tpu_custom_call.1} parent=5 // pred_region
        %s141 = ssub.s32 %s18, 1
      $region12: #{tpu_custom_call.1} parent=5 // pred_fallthru
        _
      %p142 = scmp.lt.s32.totalorder %s18, 4
      // Predicated region
      $region13: #{tpu_custom_call.1} parent=5 // pred_check
        %p143 = pneg %p142
      $region14: #{tpu_custom_call.1} parent=5 // pred_check_branch
        %145 = sbr.rel (%p143) target = $region16
      $region15: #{tpu_custom_call.1} parent=5 // pred_region
        // Predicated region
        $region17: #{tpu_custom_call.1} parent=15 // pred_check
          %p146 = pneg %p65
        $region18: #{tpu_custom_call.1} parent=15 // pred_check_branch
          %148 = sbr.rel (%p146) target = $region20
        $region19: #{tpu_custom_call.1} parent=15 // pred_region
          %s149 = sand.u32 %s55, 1
          %s150 = scalar_lea.sflag [#allocation5], %s149
          %s151 = sand.u32 %s55, 1
          %s152 = smul.addr %s151, 32
          %s153 = scalar_lea.vmem [#allocation4], %s152
          %s154 = sadd.s32 %s26, %s27
          %p155 = scmp.lt.s32.totalorder %s154, 1
          %s156 = scalar_select %p155, %s154, 1
          %s158 = ssub.s32 512, 512
          %159 = vsyncadd %s150, %s158
          %s160 = smul.addr %s25, 8
          %s161 = sadd.s32 %s156, %s160
          %s162 = smul.addr %s161, 128
          %s163 = scalar_lea.hbm %s0, %s162
          %s164 = sshll.u32 %s153, 4
          %s165 = int_to_ptr.vmem [resolvable:$true] %s164
          %170 = dma.hbm_to_vmem [thread:$0]  %s163, 512, %s165, %s150, 256, 128, 8
        $region20: #{tpu_custom_call.1} parent=15 // pred_fallthru
          _
      $region16: #{tpu_custom_call.1} parent=5 // pred_fallthru
        _
      %p171 = scmp.le.s32.totalorder 1, %s18
      %p172 = scmp.lt.s32.totalorder %s18, 5
      %p173 = pnand %p171, %p172
      %p174 = pneg %p173
      // Predicated region
      $region21: #{tpu_custom_call.1} parent=5 // pred_check
        _
      $region22: #{tpu_custom_call.1} parent=5 // pred_check_branch
        %176 = sbr.rel (%p173) target = $region24
      $region23: #{tpu_custom_call.1} parent=5 // pred_region
        %s177 = ssub.s32 %s18, 1
        %s178 = sand.u32 %s58, 1
        %s179 = scalar_lea.sflag [#allocation5], %s178
        %s180 = sand.u32 %s58, 1
        %s181 = smul.addr %s180, 32
        %s182 = scalar_lea.vmem [#allocation4], %s181
        // Predicated region
        $region25: #{tpu_custom_call.1} parent=23 // pred_check
          %p183 = pneg %p71
        $region26: #{tpu_custom_call.1} parent=23 // pred_check_branch
          %185 = sbr.rel (%p183) target = $region28
        $region27: #{tpu_custom_call.1} parent=23 // pred_region
          %186 = dma.done %s179, 512
        $region28: #{tpu_custom_call.1} parent=23 // pred_fallthru
          _
        %s187 = sand.u32 %s58, 1
        %s188 = scalar_lea.sflag [#allocation5], %s187
        %s189 = sand.u32 %s58, 1
        %s190 = smul.addr %s189, 32
        %s191 = scalar_lea.vmem [#allocation4], %s190
        %p192 = pneg %p71
        %p193 = pneg %p68
        %p194 = pneg %p99
        %p195 = pneg %p96
        %s196 = sand.u32 %s86, 1
        %s197 = scalar_lea.sflag [#allocation6], %s196
        %s198 = sand.u32 %s86, 1
        %s199 = smul.addr %s198, 32
        %s200 = scalar_lea.vmem [#allocation7], %s199
        %p201 = pneg %p127
        %p202 = pneg %p124
        %s203 = sand.u32 %s114, 1
        %s204 = scalar_lea.sflag [#allocation9], %s203
        %s205 = sand.u32 %s114, 1
        %s206 = smul.addr %s205, 32
        %s207 = scalar_lea.vmem [#allocation8], %s206
        %s208 = sadd.s32 %s29, %s30
        %p209 = scmp.lt.s32.totalorder %s208, 1
        %s210 = scalar_select %p209, %s208, 1
        %p211 = scmp.eq.s32.totalorder %s30, 0
        // Predicated region
        $region29: #{tpu_custom_call.1} parent=23 // pred_check
          %p212 = pneg %p211
        $region30: #{tpu_custom_call.1} parent=23 // pred_check_branch
          %214 = sbr.rel (%p212) target = $region32
        $region31: #{tpu_custom_call.1} parent=23 // pred_region
          %215 = vst [vmem:[#allocation2] sm:$0xff] 0.0
          %216 = vst [vmem:[#allocation2 + $0x8] sm:$0xff] 0.0
          %217 = vst [vmem:[#allocation2 + $0x10] sm:$0xff] 0.0
          %218 = vst [vmem:[#allocation2 + $0x18] sm:$0xff] 0.0
          %219 = vst [vmem:[#allocation3] sm:$0xff] 0.0
          %220 = vst [vmem:[#allocation3 + $0x8] sm:$0xff] 0.0
          %221 = vst [vmem:[#allocation3 + $0x10] sm:$0xff] 0.0
          %222 = vst [vmem:[#allocation3 + $0x18] sm:$0xff] 0.0
        $region32: #{tpu_custom_call.1} parent=23 // pred_fallthru
          _
        %s223 = sadd.s32 %s29, %s30
        %s224 = smul.u32 %s223, 128
        %v225 = vlaneseq
        %v226 = vand.u32 %v225, 127
        %v227 = vld [vmem:[%s182] sm:$0xff]
        %v228 = vld [vmem:[%s182 + $0x8] sm:$0xff]
        %v229 = vld [vmem:[%s182 + $0x10] sm:$0xff]
        %v230 = vld [vmem:[%s182 + $0x18] sm:$0xff]
        %v231 = vstv %s224
        %v232 = vadd.s32 %v231, %v226
        %vm233 = vcmp.lt.s32.totalorder %v232, 192
        %v234 = vsel %vm233, 1, 0
        %vm235 = vcmp.eq.s32.totalorder %v234, 1
        %v236 = vsel %vm235, %v227, 0.0
        %v237 = vsel %vm235, %v228, 0.0
        %v238 = vsel %vm235, %v229, 0.0
        %v239 = vsel %vm235, %v230, 0.0
        %v240 = vld [vmem:[#allocation2] sm:$0xff]
        %v241 = vld [vmem:[#allocation2 + $0x8] sm:$0xff]
        %v242 = vld [vmem:[#allocation2 + $0x10] sm:$0xff]
        %v243 = vld [vmem:[#allocation2 + $0x18] sm:$0xff]
        %v244 = vadd.f32 %v240, %v236
        %v245 = vadd.f32 %v241, %v237
        %v246 = vadd.f32 %v242, %v238
        %v247 = vadd.f32 %v243, %v239
        %248 = vst [vmem:[#allocation2] sm:$0xff] %v244
        %249 = vst [vmem:[#allocation2 + $0x8] sm:$0xff] %v245
        %250 = vst [vmem:[#allocation2 + $0x10] sm:$0xff] %v246
        %251 = vst [vmem:[#allocation2 + $0x18] sm:$0xff] %v247
        %v252 = vld [vmem:[#allocation3] sm:$0xff]
        %v253 = vld [vmem:[#allocation3 + $0x8] sm:$0xff]
        %v254 = vld [vmem:[#allocation3 + $0x10] sm:$0xff]
        %v255 = vld [vmem:[#allocation3 + $0x18] sm:$0xff]
        %v256 = vmul.f32 %v236, %v236
        %v257 = vmul.f32 %v237, %v237
        %v258 = vmul.f32 %v238, %v238
        %v259 = vmul.f32 %v239, %v239
        %v260 = vadd.f32 %v252, %v256
        %v261 = vadd.f32 %v253, %v257
        %v262 = vadd.f32 %v254, %v258
        %v263 = vadd.f32 %v255, %v259
        %264 = vst [vmem:[#allocation3] sm:$0xff] %v260
        %265 = vst [vmem:[#allocation3 + $0x8] sm:$0xff] %v261
        %266 = vst [vmem:[#allocation3 + $0x10] sm:$0xff] %v262
        %267 = vst [vmem:[#allocation3 + $0x18] sm:$0xff] %v263
        // Predicated region
        $region33: #{tpu_custom_call.1} parent=23 // pred_check
          %p268 = pneg %p211
        $region34: #{tpu_custom_call.1} parent=23 // pred_check_branch
          %270 = sbr.rel (%p268) target = $region36
        $region35: #{tpu_custom_call.1} parent=23 // pred_region
          %v271 = vld [vmem:[#allocation2] sm:$0xff]
          %v272 = vld [vmem:[#allocation2 + $0x8] sm:$0xff]
          %v273 = vld [vmem:[#allocation2 + $0x10] sm:$0xff]
          %v274 = vld [vmem:[#allocation2 + $0x18] sm:$0xff]
          %275 = vst [vmem:[%s200] sm:$0xff] %v271
          %276 = vst [vmem:[%s200 + $0x8] sm:$0xff] %v272
          %277 = vst [vmem:[%s200 + $0x10] sm:$0xff] %v273
          %278 = vst [vmem:[%s200 + $0x18] sm:$0xff] %v274
          %v279 = vld [vmem:[#allocation3] sm:$0xff]
          %v280 = vld [vmem:[#allocation3 + $0x8] sm:$0xff]
          %v281 = vld [vmem:[#allocation3 + $0x10] sm:$0xff]
          %v282 = vld [vmem:[#allocation3 + $0x18] sm:$0xff]
          %283 = vst [vmem:[%s207] sm:$0xff] %v279
          %284 = vst [vmem:[%s207 + $0x8] sm:$0xff] %v280
          %285 = vst [vmem:[%s207 + $0x10] sm:$0xff] %v281
          %286 = vst [vmem:[%s207 + $0x18] sm:$0xff] %v282
        $region36: #{tpu_custom_call.1} parent=23 // pred_fallthru
          _
        %s287 = sand.u32 %s86, 1
        %s288 = scalar_lea.sflag [#allocation6], %s287
        %s289 = sand.u32 %s86, 1
        %s290 = smul.addr %s289, 32
        %s291 = scalar_lea.vmem [#allocation7], %s290
        %s292 = sand.u32 %s114, 1
        %s293 = scalar_lea.sflag [#allocation9], %s292
        %s294 = sand.u32 %s114, 1
        %s295 = smul.addr %s294, 32
        %s296 = scalar_lea.vmem [#allocation8], %s295
        // Predicated region
        $region37: #{tpu_custom_call.1} parent=23 // pred_check
          %p297 = pneg %p96
        $region38: #{tpu_custom_call.1} parent=23 // pred_check_branch
          %299 = sbr.rel (%p297) target = $region40
        $region39: #{tpu_custom_call.1} parent=23 // pred_region
          %s301 = ssub.s32 512, 512
          %302 = vsyncadd %s288, %s301
          %s303 = smul.addr %s29, 4
          %s304 = smul.addr %s28, 8
          %s305 = sadd.s32 %s303, %s304
          %s306 = smul.addr %s305, 128
          %s307 = scalar_lea.hbm %s1, %s306
          %s308 = sshll.u32 %s291, 4
          %s309 = int_to_ptr.vmem [resolvable:$true] %s308
          %314 = dma.vmem_to_hbm [thread:$0]  %s309, 512, %s307, %s288, 128, 128, 8
        $region40: #{tpu_custom_call.1} parent=23 // pred_fallthru
          _
        // Predicated region
        $region41: #{tpu_custom_call.1} parent=23 // pred_check
          %p315 = pneg %p124
        $region42: #{tpu_custom_call.1} parent=23 // pred_check_branch
          %317 = sbr.rel (%p315) target = $region44
        $region43: #{tpu_custom_call.1} parent=23 // pred_region
          %s319 = ssub.s32 512, 512
          %320 = vsyncadd %s293, %s319
          %s321 = smul.addr %s29, 4
          %s322 = smul.addr %s28, 8
          %s323 = sadd.s32 %s321, %s322
          %s324 = smul.addr %s323, 128
          %s325 = scalar_lea.hbm %s2, %s324
          %s326 = sshll.u32 %s296, 4
          %s327 = int_to_ptr.vmem [resolvable:$true] %s326
          %332 = dma.vmem_to_hbm [thread:$0]  %s327, 512, %s325, %s293, 128, 128, 8
        $region44: #{tpu_custom_call.1} parent=23 // pred_fallthru
          _
      $region24: #{tpu_custom_call.1} parent=5 // pred_fallthru
        _
      %p333 = scmp.le.s32.totalorder 2, %s18
      // Predicated region
      $region45: #{tpu_custom_call.1} parent=5 // pred_check
        %p334 = pneg %p333
      $region46: #{tpu_custom_call.1} parent=5 // pred_check_branch
        %336 = sbr.rel (%p334) target = $region48
      $region47: #{tpu_custom_call.1} parent=5 // pred_region
        %s337 = ssub.s32 %s18, 2
        // Predicated region
        $region49: #{tpu_custom_call.1} parent=47 // pred_check
          %p338 = pneg %p102
        $region50: #{tpu_custom_call.1} parent=47 // pred_check_branch
          %340 = sbr.rel (%p338) target = $region52
        $region51: #{tpu_custom_call.1} parent=47 // pred_region
          %s341 = sand.u32 %s87, 1
          %s342 = scalar_lea.sflag [#allocation6], %s341
          %s343 = sand.u32 %s87, 1
          %s344 = smul.addr %s343, 32
          %s345 = scalar_lea.vmem [#allocation7], %s344
          %346 = dma.done %s342, 512
        $region52: #{tpu_custom_call.1} parent=47 // pred_fallthru
          _
        // Predicated region
        $region53: #{tpu_custom_call.1} parent=47 // pred_check
          %p347 = pneg %p130
        $region54: #{tpu_custom_call.1} parent=47 // pred_check_branch
          %349 = sbr.rel (%p347) target = $region56
        $region55: #{tpu_custom_call.1} parent=47 // pred_region
          %s350 = sand.u32 %s115, 1
          %s351 = scalar_lea.sflag [#allocation9], %s350
          %s352 = sand.u32 %s115, 1
          %s353 = smul.addr %s352, 32
          %s354 = scalar_lea.vmem [#allocation8], %s353
          %355 = dma.done %s351, 512
        $region56: #{tpu_custom_call.1} parent=47 // pred_fallthru
          _
      $region48: #{tpu_custom_call.1} parent=5 // pred_fallthru
        _
    $region6: #{tpu_custom_call.1} parent=1 // loop_footer
      %s22 = sadd.s32 1, %s18
    $region7: #{tpu_custom_call.1} parent=1 // loop_footer_branch
      %17 = sbr.rel target = $region3
    $region8: #{tpu_custom_call.1} parent=1 // loop_exit
      _
    %356 = vsyncpa [#allocation5], 1
    %s357 = scalar_lea.sflag [#allocation5], 1
    %358 = vsyncpa %s357, 1
    %359 = vsyncpa [#allocation6], 1
    %s360 = scalar_lea.sflag [#allocation6], 1
    %361 = vsyncpa %s360, 1
    %362 = vsyncpa [#allocation9], 1
    %s363 = scalar_lea.sflag [#allocation9], 1
    %364 = vsyncpa %s363, 1

</llo_original>
